<compile_context>
chip_gen: v7x
topology: tpu7x:2x2x1
jax: 0.10.0
libtpu: 0.0.40
codegen_flags: <defaults>
</compile_context>

<pallas_src>
import functools

import jax
import jax.numpy as jnp
from jax.experimental import pallas as pl
from jax.experimental.pallas import tpu as pltpu


def _round_up(x, m):
    return (x + m - 1) // m * m


def _cdiv(a, b):
    return -(-a // b)


_SINGLE_STEP_MAX_ROWS = 512   # up to here: one full-array block (no per-step overhead)
_MAX_BLOCK_ROWS = 2048        # rows per step for larger batches (1 MiB f32 tile at VC=128)


def _choose_block_b(B):
    """Batch tile size.

    * B <= 512: a single block equal to the full batch (no masking, no padding,
      no per-step pipeline overhead) — best on single-TC v5e/v6e and fine on v7x.
    * B  > 512: blocks of <= 2048 rows, with an even number of grid steps so both
      v7x TensorCores get equal work; last block may be partial (masked stores).
    """
    if B <= _SINGLE_STEP_MAX_ROWS:
        return B
    steps = max(2, _cdiv(B, _MAX_BLOCK_ROWS))
    steps += steps % 2
    return _round_up(_cdiv(B, steps), 8)


def _adapter_kernel(feat_ref, w1_ref, b1_ref, w2_ref, b2_ref, w3_ref, b3_ref,
                    out_ref, *, residual_scale, post_scale):
    x = feat_ref[...]                                            # (TB, V*C)

    # global_f: Linear(V*C -> C) with fusion_ratio/BN1/BN2 affines pre-folded -> ReLU
    g = jnp.dot(x, w1_ref[...], preferred_element_type=jnp.float32) + b1_ref[...]
    g = jnp.maximum(g, 0.0)                                      # (TB, C) f32

    # view_f: Linear(C -> C) -> ReLU -> Linear(C -> V*C) (adapter_ratio folded) -> ReLU
    v = jnp.dot(g.astype(w2_ref.dtype), w2_ref[...],
                preferred_element_type=jnp.float32) + b2_ref[...]
    v = jnp.maximum(v, 0.0)                                      # (TB, C)
    v = jnp.dot(v.astype(w3_ref.dtype), w3_ref[...],
                preferred_element_type=jnp.float32) + b3_ref[...]
    v = jnp.maximum(v, 0.0)                                      # (TB, V*C)

    if post_scale is not None:      # only when adapter_ratio <= 0 (couldn't fold into w3/b3)
        v = v * post_scale

    # Residual re-read from the already-resident VMEM input tile; blend in f32.
    out = v + feat_ref[...].astype(jnp.float32) * residual_scale
    out_ref[...] = out.astype(out_ref.dtype)


def _fold_params(params, *, num_views, in_features, adapter_ratio, compute_dtype):
    """Fold fusion_ratio + both eval-mode BN affines into w1/b1 and adapter_ratio into w3/b3.

    Weights are cast to compute_dtype (f32 or bf16); biases stay f32 (tiny, added to the
    f32 accumulator).
    """
    V, C = num_views, in_features
    VC = V * C
    eps = 1e-5
    f32 = jnp.float32

    # BN1 (BatchNormPoint over C) preceded by per-view fusion_ratio scaling:
    #   per flattened column j = v*C + c:  scale1[j] = fusion[v]*gamma1[c]/sqrt(var1[c]+eps)
    inv1 = params["bn1_gamma"].astype(f32) / jnp.sqrt(params["bn1_var"].astype(f32) + eps)
    scale1 = (params["fusion_ratio"].astype(f32)[:, None] * inv1[None, :]).reshape(VC)
    shift1 = jnp.tile(params["bn1_beta"].astype(f32)
                      - params["bn1_mean"].astype(f32) * inv1, (V,))          # (VC,)
    # BN2 (over C), eval mode
    inv2 = params["bn2_gamma"].astype(f32) / jnp.sqrt(params["bn2_var"].astype(f32) + eps)
    t2 = params["bn2_beta"].astype(f32) - params["bn2_mean"].astype(f32) * inv2

    w1 = params["w1"].astype(f32)                   # (VC, C)
    b1 = params["b1"].astype(f32)                   # (C,)
    # (x*scale1 + shift1) @ w1 + b1, then *inv2 + t2  ==  x @ w1f + b1f
    w1f = (scale1[:, None] * w1) * inv2[None, :]
    b1f = (shift1 @ w1 + b1) * inv2 + t2

    w2 = params["w2"].astype(f32)                   # (C, C)
    b2 = params["b2"].astype(f32)
    w3 = params["w3"].astype(f32)                   # (C, VC)
    b3 = params["b3"].astype(f32)

    a = float(adapter_ratio)
    if a > 0.0:
        # relu(z) * a == relu(a * z) for a > 0  ->  fold adapter_ratio into w3/b3
        w3f, b3f, post_scale = a * w3, a * b3, None
    else:
        w3f, b3f, post_scale = w3, b3, a            # fallback: scale applied in-kernel
    residual_scale = 1.0 - a

    return (w1f.astype(compute_dtype), b1f.reshape(1, C),
            w2.astype(compute_dtype), b2.reshape(1, C),
            w3f.astype(compute_dtype), b3f.reshape(1, VC),
            post_scale, residual_scale)


def adapter_forward(feat, params, *, num_views, in_features, adapter_ratio,
                    block_b=None, use_bf16=False, donate_input=False):
    """feat: (B, V*C).  Returns (B, V*C) float32 (or bfloat16 when use_bf16=True).

    use_bf16: bf16 feat tiles / weights / output -> ~half the HBM bytes (f32 accumulation
    inside the kernel).  Best when feat already arrives in bf16 (or the cast fuses with
    the producer); otherwise the upstream cast adds one extra pass over feat.
    donate_input: set True only if the caller donates feat's buffer — enables in-place
    output aliasing on the f32 path too.
    """
    B, VC = feat.shape
    C = in_features
    assert VC == num_views * C

    compute_dtype = jnp.bfloat16 if use_bf16 else jnp.float32
    out_dtype = compute_dtype
    (w1, b1, w2, b2, w3, b3, post_scale, residual_scale) = _fold_params(
        params, num_views=num_views, in_features=in_features,
        adapter_ratio=adapter_ratio, compute_dtype=compute_dtype)

    if block_b is None:
        block_b = _choose_block_b(B)
    else:
        block_b = min(int(block_b), B)
        if block_b < B:
            block_b = max(8, block_b // 8 * 8)
    grid_b = _cdiv(B, block_b)

    x = feat if feat.dtype == compute_dtype else feat.astype(compute_dtype)

    kernel = functools.partial(_adapter_kernel,
                               residual_scale=float(residual_scale),
                               post_scale=post_scale)

    # Weights/biases use a constant index_map (fetched once) -> single-buffer them.
    def _const2d(r, c):
        return pl.BlockSpec((r, c), lambda i: (0, 0), pipeline_mode=pl.Buffered(1))

    grid_spec = pltpu.PrefetchScalarGridSpec(
        num_scalar_prefetch=0,
        grid=(grid_b,),
        in_specs=[
            pl.BlockSpec((block_b, VC), lambda i: (i, 0)),   # feat (tiled over batch)
            _const2d(VC, C), _const2d(1, C),                 # w1, b1 (affines folded in)
            _const2d(C, C), _const2d(1, C),                  # w2, b2
            _const2d(C, VC), _const2d(1, VC),                # w3, b3 (adapter_ratio folded)
        ],
        out_specs=pl.BlockSpec((block_b, VC), lambda i: (i, 0)),
    )

    in_item = jnp.dtype(compute_dtype).itemsize
    out_item = jnp.dtype(out_dtype).itemsize
    weight_bytes = sum(int(a.size) * a.dtype.itemsize for a in (w1, b1, w2, b2, w3, b3))
    tile_bytes = 2 * block_b * VC * in_item + 2 * block_b * VC * out_item + weight_bytes
    vmem_limit = int(min(64 * 2**20, max(32 * 2**20, 2 * tile_bytes)))

    flops = 2 * B * (VC * C + C * C + C * VC)
    bytes_acc = B * VC * (in_item + out_item) + weight_bytes
    cost = pl.CostEstimate(flops=flops, transcendentals=0, bytes_accessed=bytes_acc)

    # Alias output onto the kernel input only when that buffer is a jit-local temporary
    # (the bf16 cast) or the caller donated feat; aliasing an un-donated entry parameter
    # would make XLA insert a defensive copy of feat (an extra full HBM pass).
    alias_ok = (x.dtype == out_dtype) and ((x is not feat) or donate_input)
    io_alias = {0: 0} if alias_ok else {}

    return pl.pallas_call(
        kernel,
        out_shape=jax.ShapeDtypeStruct((B, VC), out_dtype),
        grid_spec=grid_spec,
        compiler_params=pltpu.CompilerParams(
            dimension_semantics=("parallel",),
            vmem_limit_bytes=vmem_limit),
        cost_estimate=cost,
        input_output_aliases=io_alias,
    )(x, w1, b1, w2, b2, w3, b3)


def _reference(feat, params, *, num_views, in_features, adapter_ratio):
    """Pure-JAX reference mirroring the PyTorch module in eval mode."""
    B = feat.shape[0]
    V, C = num_views, in_features
    eps = 1e-5
    img = feat.reshape(B, V, C)
    res = feat.reshape(B, V * C)
    x = img * params["fusion_ratio"].reshape(1, V, 1)
    x = (x - params["bn1_mean"]) / jnp.sqrt(params["bn1_var"] + eps)
    x = x * params["bn1_gamma"] + params["bn1_beta"]
    x = x.reshape(B, V * C)
    g = x @ params["w1"] + params["b1"]
    g = (g - params["bn2_mean"]) / jnp.sqrt(params["bn2_var"] + eps)
    g = g * params["bn2_gamma"] + params["bn2_beta"]
    g = jax.nn.relu(g)
    v = jax.nn.relu(g @ params["w2"] + params["b2"])
    v = jax.nn.relu(v @ params["w3"] + params["b3"])
    return v * adapter_ratio + res * (1.0 - adapter_ratio)


def _init_params(key, num_views, in_features, fusion_init):
    V, C = num_views, in_features
    ks = jax.random.split(key, 12)
    return {
        "fusion_ratio": jnp.full((V,), fusion_init, jnp.float32),
        # BatchNormPoint (BN1d over C) — eval-mode running stats + affine params
        "bn1_gamma": 1.0 + 0.1 * jax.random.normal(ks[0], (C,), jnp.float32),
        "bn1_beta": 0.1 * jax.random.normal(ks[1], (C,), jnp.float32),
        "bn1_mean": 0.1 * jax.random.normal(ks[2], (C,), jnp.float32),
        "bn1_var": 0.5 + jnp.abs(jax.random.normal(ks[3], (C,), jnp.float32)),
        # Linear(V*C -> C)
        "w1": 0.05 * jax.random.normal(ks[4], (V * C, C), jnp.float32),
        "b1": 0.05 * jax.random.normal(ks[5], (C,), jnp.float32),
        # BN1d(C)
        "bn2_gamma": 1.0 + 0.1 * jax.random.normal(ks[6], (C,), jnp.float32),
        "bn2_beta": 0.1 * jax.random.normal(ks[7], (C,), jnp.float32),
        "bn2_mean": 0.1 * jax.random.normal(ks[8], (C,), jnp.float32),
        "bn2_var": 0.5 + jnp.abs(jax.random.normal(ks[9], (C,), jnp.float32)),
        # view_f: Linear(C -> C), Linear(C -> V*C)
        "w2": 0.05 * jax.random.normal(ks[10], (C, C), jnp.float32),
        "b2": jnp.zeros((C,), jnp.float32),
        "w3": 0.05 * jax.random.normal(ks[11], (C, V * C), jnp.float32),
        "b3": jnp.zeros((V * C,), jnp.float32),
    }


if __name__ == "__main__":
    # Config consistent with the module: NUM_VIEWS=4, CHANNEL=32, ADAPTER.RATIO=0.6,
    # ADAPTER.INIT=0.5, DROPOUT=0.0 (eval -> identity).
    NUM_VIEWS = 4
    IN_FEATURES = 32
    ADAPTER_RATIO = 0.6
    FUSION_INIT = 0.5

    key = jax.random.PRNGKey(0)
    k1, k2, k3, kp = jax.random.split(key, 4)
    params = _init_params(kp, NUM_VIEWS, IN_FEATURES, FUSION_INIT)

    fwd = jax.jit(functools.partial(adapter_forward, num_views=NUM_VIEWS,
                                    in_features=IN_FEATURES,
                                    adapter_ratio=ADAPTER_RATIO))
    fwd_bf16 = jax.jit(functools.partial(adapter_forward, num_views=NUM_VIEWS,
                                         in_features=IN_FEATURES,
                                         adapter_ratio=ADAPTER_RATIO,
                                         use_bf16=True))

    # Small batch: single full-array block (block_b = B = 8).
    B = 8
    feat = jax.random.normal(k1, (B, NUM_VIEWS * IN_FEATURES), jnp.float32)
    out = jax.block_until_ready(fwd(feat, params))
    ref = _reference(feat, params, num_views=NUM_VIEWS, in_features=IN_FEATURES,
                     adapter_ratio=ADAPTER_RATIO)
    assert out.shape == (B, NUM_VIEWS * IN_FEATURES) and out.dtype == jnp.float32
    assert jnp.allclose(out, ref, atol=1e-4, rtol=1e-4), "mismatch vs reference (B=8)"

    # Batch not divisible by 8: still one full-array block (block_b = 300) — no pad, no slice.
    B2 = 300
    feat2 = jax.random.normal(k2, (B2, NUM_VIEWS * IN_FEATURES), jnp.float32)
    out2 = jax.block_until_ready(fwd(feat2, params))
    ref2 = _reference(feat2, params, num_views=NUM_VIEWS, in_features=IN_FEATURES,
                      adapter_ratio=ADAPTER_RATIO)
    assert out2.shape == (B2, NUM_VIEWS * IN_FEATURES)
    assert jnp.allclose(out2, ref2, atol=1e-4, rtol=1e-4), "mismatch vs reference (B=300)"

    # Larger batch: multi-step parallel grid with a masked partial last block (no pad/slice).
    B3 = 1043
    feat3 = jax.random.normal(k3, (B3, NUM_VIEWS * IN_FEATURES), jnp.float32)
    out3 = jax.block_until_ready(fwd(feat3, params))
    ref3 = _reference(feat3, params, num_views=NUM_VIEWS, in_features=IN_FEATURES,
                      adapter_ratio=ADAPTER_RATIO)
    assert out3.shape == (B3, NUM_VIEWS * IN_FEATURES)
    assert jnp.allclose(out3, ref3, atol=1e-4, rtol=1e-4), "mismatch vs reference (B=1043)"

    # bf16 fast path (halves HBM bytes; bf16-rounded residual -> looser tolerance).
    out_bf = jax.block_until_ready(fwd_bf16(feat2, params))
    assert out_bf.shape == (B2, NUM_VIEWS * IN_FEATURES) and out_bf.dtype == jnp.bfloat16
    assert jnp.allclose(out_bf.astype(jnp.float32), ref2, atol=3e-2, rtol=3e-2), \
        "mismatch vs reference (bf16 path)"

    print("KERNEL_OK")
</pallas_src>

<mosaic_0001>
module attributes {stable_mosaic.version = 11 : i64} {
  func.func @_adapter_kernel(%arg0: i32, %arg1: memref<8x128xf32, #tpu.memory_space<vmem>>, %arg2: memref<128x32xf32, #tpu.memory_space<vmem>>, %arg3: memref<1x32xf32, #tpu.memory_space<vmem>>, %arg4: memref<32x32xf32, #tpu.memory_space<vmem>>, %arg5: memref<1x32xf32, #tpu.memory_space<vmem>>, %arg6: memref<32x128xf32, #tpu.memory_space<vmem>>, %arg7: memref<1x128xf32, #tpu.memory_space<vmem>>, %arg8: memref<8x128xf32, #tpu.memory_space<vmem>>) attributes {dimension_semantics = [#tpu.dimension_semantics<parallel>], iteration_bounds = array<i64: 1>, scalar_prefetch = 0 : i64, scratch_operands = 0 : i64, tpu.core_type = #tpu.core_type<tc>, window_params = [{transform_indices = @transform_0, window_bounds = array<i64: 8, 128>}, {pipeline_mode = #tpu.pipeline_mode<synchronous>, transform_indices = @transform_1, window_bounds = array<i64: 128, 32>}, {pipeline_mode = #tpu.pipeline_mode<synchronous>, transform_indices = @transform_2, window_bounds = array<i64: 1, 32>}, {pipeline_mode = #tpu.pipeline_mode<synchronous>, transform_indices = @transform_3, window_bounds = array<i64: 32, 32>}, {pipeline_mode = #tpu.pipeline_mode<synchronous>, transform_indices = @transform_4, window_bounds = array<i64: 1, 32>}, {pipeline_mode = #tpu.pipeline_mode<synchronous>, transform_indices = @transform_5, window_bounds = array<i64: 32, 128>}, {pipeline_mode = #tpu.pipeline_mode<synchronous>, transform_indices = @transform_6, window_bounds = array<i64: 1, 128>}, {transform_indices = @transform_7, window_bounds = array<i64: 8, 128>}]} {
    %c0 = arith.constant 0 : index
    %c0_0 = arith.constant 0 : index
    %0 = vector.load %arg1[%c0, %c0_0] : memref<8x128xf32, #tpu.memory_space<vmem>>, vector<8x128xf32>
    %c0_1 = arith.constant 0 : index
    %c0_2 = arith.constant 0 : index
    %1 = vector.load %arg2[%c0_1, %c0_2] : memref<128x32xf32, #tpu.memory_space<vmem>>, vector<128x32xf32>
    %cst = arith.constant dense<0.000000e+00> : vector<8x32xf32>
    %2 = tpu.matmul %0, %1, %cst {dimension_numbers = #tpu.dot_dimension_numbers<[1], [0], [0], [1], [0, 0, 1, 1], [], []>} : vector<8x128xf32>, vector<128x32xf32>, vector<8x32xf32> -> vector<8x32xf32>
    %c0_3 = arith.constant 0 : index
    %c0_4 = arith.constant 0 : index
    %3 = vector.load %arg3[%c0_3, %c0_4] : memref<1x32xf32, #tpu.memory_space<vmem>>, vector<1x32xf32>
    %4 = vector.broadcast %3 : vector<1x32xf32> to vector<8x32xf32>
    %5 = arith.addf %2, %4 : vector<8x32xf32>
    %cst_5 = arith.constant 0.000000e+00 : f32
    %6 = vector.broadcast %cst_5 : f32 to vector<8x32xf32>
    %7 = arith.maximumf %5, %6 : vector<8x32xf32>
    %c0_6 = arith.constant 0 : index
    %c0_7 = arith.constant 0 : index
    %8 = vector.load %arg4[%c0_6, %c0_7] : memref<32x32xf32, #tpu.memory_space<vmem>>, vector<32x32xf32>
    %cst_8 = arith.constant dense<0.000000e+00> : vector<8x32xf32>
    %9 = tpu.matmul %7, %8, %cst_8 {dimension_numbers = #tpu.dot_dimension_numbers<[1], [0], [0], [1], [0, 0, 1, 1], [], []>} : vector<8x32xf32>, vector<32x32xf32>, vector<8x32xf32> -> vector<8x32xf32>
    %c0_9 = arith.constant 0 : index
    %c0_10 = arith.constant 0 : index
    %10 = vector.load %arg5[%c0_9, %c0_10] : memref<1x32xf32, #tpu.memory_space<vmem>>, vector<1x32xf32>
    %11 = vector.broadcast %10 : vector<1x32xf32> to vector<8x32xf32>
    %12 = arith.addf %9, %11 : vector<8x32xf32>
    %cst_11 = arith.constant 0.000000e+00 : f32
    %13 = vector.broadcast %cst_11 : f32 to vector<8x32xf32>
    %14 = arith.maximumf %12, %13 : vector<8x32xf32>
    %c0_12 = arith.constant 0 : index
    %c0_13 = arith.constant 0 : index
    %15 = vector.load %arg6[%c0_12, %c0_13] : memref<32x128xf32, #tpu.memory_space<vmem>>, vector<32x128xf32>
    %cst_14 = arith.constant dense<0.000000e+00> : vector<8x128xf32>
    %16 = tpu.matmul %14, %15, %cst_14 {dimension_numbers = #tpu.dot_dimension_numbers<[1], [0], [0], [1], [0, 0, 1, 1], [], []>} : vector<8x32xf32>, vector<32x128xf32>, vector<8x128xf32> -> vector<8x128xf32>
    %c0_15 = arith.constant 0 : index
    %c0_16 = arith.constant 0 : index
    %17 = vector.load %arg7[%c0_15, %c0_16] : memref<1x128xf32, #tpu.memory_space<vmem>>, vector<1x128xf32>
    %18 = vector.broadcast %17 : vector<1x128xf32> to vector<8x128xf32>
    %19 = arith.addf %16, %18 : vector<8x128xf32>
    %cst_17 = arith.constant 0.000000e+00 : f32
    %20 = vector.broadcast %cst_17 : f32 to vector<8x128xf32>
    %21 = arith.maximumf %19, %20 : vector<8x128xf32>
    %c0_18 = arith.constant 0 : index
    %c0_19 = arith.constant 0 : index
    %22 = vector.load %arg1[%c0_18, %c0_19] : memref<8x128xf32, #tpu.memory_space<vmem>>, vector<8x128xf32>
    %cst_20 = arith.constant 4.000000e-01 : f32
    %23 = vector.broadcast %cst_20 : f32 to vector<8x128xf32>
    %24 = arith.mulf %22, %23 : vector<8x128xf32>
    %25 = arith.addf %21, %24 : vector<8x128xf32>
    %c0_21 = arith.constant 0 : index
    %c0_22 = arith.constant 0 : index
    %26 = vector.load %arg8[%c0_21, %c0_22] : memref<8x128xf32, #tpu.memory_space<vmem>>, vector<8x128xf32>
    tpu.vector_store %arg8[%c0_21, %c0_22], %25 {strides = array<i32>} : memref<8x128xf32, #tpu.memory_space<vmem>>, vector<8x128xf32>,
    return
  }
  func.func @transform_0(%arg0: i32) -> (i32, i32) {
    %c0_i32 = arith.constant 0 : i32
    %c0_i32_0 = arith.constant 0 : i32
    return %arg0, %c0_i32 : i32, i32
  }
  func.func @transform_1(%arg0: i32) -> (i32, i32) {
    %c0_i32 = arith.constant 0 : i32
    %c0_i32_0 = arith.constant 0 : i32
    %c0_i32_1 = arith.constant 0 : i32
    return %c0_i32, %c0_i32_0 : i32, i32
  }
  func.func @transform_2(%arg0: i32) -> (i32, i32) {
    %c0_i32 = arith.constant 0 : i32
    %c0_i32_0 = arith.constant 0 : i32
    %c0_i32_1 = arith.constant 0 : i32
    return %c0_i32, %c0_i32_0 : i32, i32
  }
  func.func @transform_3(%arg0: i32) -> (i32, i32) {
    %c0_i32 = arith.constant 0 : i32
    %c0_i32_0 = arith.constant 0 : i32
    %c0_i32_1 = arith.constant 0 : i32
    return %c0_i32, %c0_i32_0 : i32, i32
  }
  func.func @transform_4(%arg0: i32) -> (i32, i32) {
    %c0_i32 = arith.constant 0 : i32
    %c0_i32_0 = arith.constant 0 : i32
    %c0_i32_1 = arith.constant 0 : i32
    return %c0_i32, %c0_i32_0 : i32, i32
  }
  func.func @transform_5(%arg0: i32) -> (i32, i32) {
    %c0_i32 = arith.constant 0 : i32
    %c0_i32_0 = arith.constant 0 : i32
    %c0_i32_1 = arith.constant 0 : i32
    return %c0_i32, %c0_i32_0 : i32, i32
  }
  func.func @transform_6(%arg0: i32) -> (i32, i32) {
    %c0_i32 = arith.constant 0 : i32
    %c0_i32_0 = arith.constant 0 : i32
    %c0_i32_1 = arith.constant 0 : i32
    return %c0_i32, %c0_i32_0 : i32, i32
  }
  func.func @transform_7(%arg0: i32) -> (i32, i32) {
    %c0_i32 = arith.constant 0 : i32
    %c0_i32_0 = arith.constant 0 : i32
    return %arg0, %c0_i32 : i32, i32
  }
}

</mosaic_0001>

<llo_original>
// kernel: tile.9
$region0: #{tile.9}
  %s0 = inlined_call_operand.vmem [shape: f32[4,32], index: 0, kind: input, shape index: {}]
  %s1 = inlined_call_operand.vmem [shape: f32[128], index: 1, kind: output, shape index: {}]
  $region1: #{tile.9} parent=0
    #allocation0 [shape = 'u8[4096]{0}', space=vmem, size = 0x1000, scoped, tag = 'scoped mem for output reshape']
    #allocation1 [shape = 'u8[4096]{0}', space=vmem, size = 0x1000, scoped, tag = 'scoped mem for input reshape']
    %s3 = sshllo.u32 0, 4
    %v4 = vld [vmem:[%s0] sm:%s3]
    %5 = vst [vmem:[#allocation1] sm:%s3] %v4
    %v6 = vld [vmem:[#allocation1] sm:$0x1]
    %vm7 = vcmask 261120
    %8 = vst.msk [vmem:[#allocation0] sm:$0x1] %vm7, %v6
    %s9 = scalar_lea.vmem [#allocation1], 3
    %v10 = vld [vmem:[%s9] sm:$0x1]
    %11 = vrot.lane.b32.xlu0 %v10, 96
    %v12 = vpop.permute.xlu0 %11
    %vm13 = vcmask 1048320
    %14 = vst.msk [vmem:[#allocation0] sm:$0x1] %vm13, %v12
    %s15 = scalar_lea.vmem [#allocation1], 2
    %v16 = vld [vmem:[%s15] sm:$0x1]
    %17 = vrot.lane.b32.xlu0 %v16, 64
    %v18 = vpop.permute.xlu0 %17
    %vm19 = vcmask 785920
    %20 = vst.msk [vmem:[#allocation0] sm:$0x1] %vm19, %v18
    %s21 = scalar_lea.vmem [#allocation1], 1
    %v22 = vld [vmem:[%s21] sm:$0x1]
    %23 = vrot.lane.b32.xlu0 %v22, 32
    %v24 = vpop.permute.xlu0 %23
    %vm25 = vcmask 523520
    %26 = vst.msk [vmem:[#allocation0] sm:$0x1] %vm25, %v24
    %s28 = sshllo.u32 0, 1
    %v30 = vld [vmem:[#allocation0] sm:%s28]
    %s31 = sshllo.u32 0, 1
    %32 = vst [vmem:[%s1] sm:%s31] %v30

// kernel: tile.8
$region0: #{tile.8}
  #allocation0 [shape = 's32[1]{0}', space=sflag, size = 0x4, scoped, tag = 'scoped memory for tile.8']
  %s0 = inlined_call_operand.vmem [shape: f32[32], index: 0, kind: input, shape index: {}]
  %s1 = inlined_call_operand.vmem [shape: f32[4,32], index: 1, kind: output, shape index: {}]
  // Predicated region
  $region2: #{tile.8} parent=0 // pred_check
    _
  $region3: #{tile.8} parent=0 // pred_check_branch
    %3 = sbr.rel (0) target = $region5
  $region4: #{tile.8} parent=0 // pred_region
    _
  $region5: #{tile.8} parent=0 // pred_fallthru
    _
  %v4 = vld [vmem:[%s0] ss:$0 sm:$0xff]
  %5 = vst [vmem:[%s1] sm:$0xf] %v4

// kernel: adapter_forward.1
$region0: #{adapter_forward.1}
  #allocation0 [shape = 'u32[]', space=smem, size = 0x4, offset = 0x4, fixed_abs, tag = 'smem constant byte address 0x4 - core index']
  #allocation1 [shape = 'u32[144,128]{1,0:T(1,128)}', space=vmem, size = 0x12000, scoped, tag = 'internal scratch']
  %s0 = inlined_call_operand.vmem [shape: f32[8,128], index: 0, kind: input, shape index: {}]
  %s1 = inlined_call_operand.vmem [shape: f32[128,32], index: 1, kind: input, shape index: {}]
  %s2 = inlined_call_operand.vmem [shape: f32[1,32], index: 2, kind: input, shape index: {}]
  %s3 = inlined_call_operand.vmem [shape: f32[32,32], index: 3, kind: input, shape index: {}]
  %s4 = inlined_call_operand.vmem [shape: f32[1,32], index: 4, kind: input, shape index: {}]
  %s5 = inlined_call_operand.vmem [shape: f32[32,128], index: 5, kind: input, shape index: {}]
  %s6 = inlined_call_operand.vmem [shape: f32[1,128], index: 6, kind: input, shape index: {}]
  %s7 = inlined_call_operand.hbm [shape: f32[8,128], index: 7, kind: output, shape index: {}]
  %s8 = sld [smem:[#allocation0]]
  $region38: #{adapter_forward.1} parent=0
    _
  %s10 = ssub.s32 1, %s8
  %s11 = scalar_select 0, %s10, %s8
  $region1: #{adapter_forward.1} parent=0
    #allocation2 [shape = 'u8[4096]{0}', space=vmem, size = 0x1000, scoped, tag = 'output window, operand 0, single buffered']
    #allocation3 [shape = 's32[1]{0}', space=sflag, size = 0x4, scoped, tag = 'scoped memory for adapter_forward.1']
    %12 = vsyncpa [#allocation3], 0
    // Predicated region
    $region2: #{adapter_forward.1} parent=1 // pred_check
      _
    $region3: #{adapter_forward.1} parent=1 // pred_check_branch
      %14 = sbr.rel (0) target = $region5
    $region4: #{adapter_forward.1} parent=1 // pred_region
      _
    $region5: #{adapter_forward.1} parent=1 // pred_fallthru
      _
    // Predicated region
    $region6: #{adapter_forward.1} parent=1 // pred_check
      _
    $region7: #{adapter_forward.1} parent=1 // pred_check_branch
      %16 = sbr.rel (0) target = $region9
    $region8: #{adapter_forward.1} parent=1 // pred_region
      _
    $region9: #{adapter_forward.1} parent=1 // pred_fallthru
      _
    // Predicated region
    $region10: #{adapter_forward.1} parent=1 // pred_check
      _
    $region11: #{adapter_forward.1} parent=1 // pred_check_branch
      %18 = sbr.rel (0) target = $region13
    $region12: #{adapter_forward.1} parent=1 // pred_region
      _
    $region13: #{adapter_forward.1} parent=1 // pred_fallthru
      _
    // Predicated region
    $region14: #{adapter_forward.1} parent=1 // pred_check
      _
    $region15: #{adapter_forward.1} parent=1 // pred_check_branch
      %20 = sbr.rel (0) target = $region17
    $region16: #{adapter_forward.1} parent=1 // pred_region
      _
    $region17: #{adapter_forward.1} parent=1 // pred_fallthru
      _
    // Predicated region
    $region18: #{adapter_forward.1} parent=1 // pred_check
      _
    $region19: #{adapter_forward.1} parent=1 // pred_check_branch
      %22 = sbr.rel (0) target = $region21
    $region20: #{adapter_forward.1} parent=1 // pred_region
      _
    $region21: #{adapter_forward.1} parent=1 // pred_fallthru
      _
    // Predicated region
    $region22: #{adapter_forward.1} parent=1 // pred_check
      _
    $region23: #{adapter_forward.1} parent=1 // pred_check_branch
      %24 = sbr.rel (0) target = $region25
    $region24: #{adapter_forward.1} parent=1 // pred_region
      _
    $region25: #{adapter_forward.1} parent=1 // pred_fallthru
      _
    // Predicated region
    $region26: #{adapter_forward.1} parent=1 // pred_check
      _
    $region27: #{adapter_forward.1} parent=1 // pred_check_branch
      %26 = sbr.rel (0) target = $region29
    $region28: #{adapter_forward.1} parent=1 // pred_region
      _
    $region29: #{adapter_forward.1} parent=1 // pred_fallthru
      _
    %v27 = vld [vmem:[%s0] sm:$0xff]
    %v28 = vld [vmem:[%s1] sm:$0xff]
    %v29 = vld [vmem:[%s1 + $0x8] sm:$0xff]
    %v30 = vld [vmem:[%s1 + $0x10] sm:$0xff]
    %v31 = vld [vmem:[%s1 + $0x18] sm:$0xff]
    %v32 = vld [vmem:[%s1 + $0x20] sm:$0xff]
    %v33 = vld [vmem:[%s1 + $0x28] sm:$0xff]
    %v34 = vld [vmem:[%s1 + $0x30] sm:$0xff]
    %v35 = vld [vmem:[%s1 + $0x38] sm:$0xff]
    %v36 = vld [vmem:[%s1 + $0x40] sm:$0xff]
    %v37 = vld [vmem:[%s1 + $0x48] sm:$0xff]
    %v38 = vld [vmem:[%s1 + $0x50] sm:$0xff]
    %v39 = vld [vmem:[%s1 + $0x58] sm:$0xff]
    %v40 = vld [vmem:[%s1 + $0x60] sm:$0xff]
    %v41 = vld [vmem:[%s1 + $0x68] sm:$0xff]
    %v42 = vld [vmem:[%s1 + $0x70] sm:$0xff]
    %v43 = vld [vmem:[%s1 + $0x78] sm:$0xff]
    %v44 = vld [vmem:[%s2] sm:$0x1]
    %v46 = vlaneseq
    %v47 = vshrl.u32 %v46, 7
    %v48 = vsub.s32 0, %v47
    %v49 = vrot.slane %v44, %v48
    %51 = vmatprep.subr.mxu0 0.0
    %52 = vmatpush1.msra.mxu0 %v28
    %53 = vmatprep.subr.mxu0 0.0
    %54 = vmatpush1.msra.mxu0 %v29
    %55 = vmatprep.subr.mxu0 0.0
    %56 = vmatpush1.msra.mxu0 %v30
    %57 = vmatprep.subr.mxu0 0.0
    %58 = vmatpush1.msra.mxu0 %v31
    %59 = vmatprep.subr.mxu0 0.0
    %60 = vmatpush1.msra.mxu0 %v32
    %61 = vmatprep.subr.mxu0 0.0
    %62 = vmatpush1.msra.mxu0 %v33
    %63 = vmatprep.subr.mxu0 0.0
    %64 = vmatpush1.msra.mxu0 %v34
    %65 = vmatprep.subr.mxu0 0.0
    %66 = vmatpush1.msra.mxu0 %v35
    %67 = vmatprep.subr.mxu0 0.0
    %68 = vmatpush1.msra.mxu0 %v36
    %69 = vmatprep.subr.mxu0 0.0
    %70 = vmatpush1.msra.mxu0 %v37
    %71 = vmatprep.subr.mxu0 0.0
    %72 = vmatpush1.msra.mxu0 %v38
    %73 = vmatprep.subr.mxu0 0.0
    %74 = vmatpush1.msra.mxu0 %v39
    %75 = vmatprep.subr.mxu0 0.0
    %76 = vmatpush1.msra.mxu0 %v40
    %77 = vmatprep.subr.mxu0 0.0
    %78 = vmatpush1.msra.mxu0 %v41
    %79 = vmatprep.subr.mxu0 0.0
    %80 = vmatpush1.msra.mxu0 %v42
    %81 = vmatprep.subr.mxu0 0.0
    %82 = vmatpush1.msra.mxu0 %v43
    %83 = vmatprep.subr.mxu0 0.0
    %84 = vmatpush1.msra.mxu0 0.0
    %85 = vmatprep.subr.mxu0 0.0
    %86 = vmatpush1.msra.mxu0 0.0
    %87 = vmatprep.subr.mxu0 0.0
    %88 = vmatpush1.msra.mxu0 0.0
    %89 = vmatprep.subr.mxu0 0.0
    %90 = vmatpush1.msra.mxu0 0.0
    %91 = vmatprep.subr.mxu0 0.0
    %92 = vmatpush1.msra.mxu0 0.0
    %93 = vmatprep.subr.mxu0 0.0
    %94 = vmatpush1.msra.mxu0 0.0
    %95 = vmatprep.subr.mxu0 0.0
    %96 = vmatpush1.msra.mxu0 0.0
    %97 = vmatprep.subr.mxu0 0.0
    %98 = vmatpush1.msra.mxu0 0.0
    %99 = vmatprep.subr.mxu0 0.0
    %100 = vmatpush1.msra.mxu0 0.0
    %101 = vmatprep.subr.mxu0 0.0
    %102 = vmatpush1.msra.mxu0 0.0
    %103 = vmatprep.subr.mxu0 0.0
    %104 = vmatpush1.msra.mxu0 0.0
    %105 = vmatprep.subr.mxu0 0.0
    %106 = vmatpush1.msra.mxu0 0.0
    %107 = vmatprep.subr.mxu0 0.0
    %108 = vmatpush1.msra.mxu0 0.0
    %109 = vmatprep.subr.mxu0 0.0
    %110 = vmatpush1.msra.mxu0 0.0
    %111 = vmatprep.subr.mxu0 0.0
    %112 = vmatpush1.msra.mxu0 0.0
    %113 = vmatprep.subr.mxu0 0.0
    %114 = vmatpush1.msra.mxu0 0.0
    %115 = vmatprep.mubr.f32.mxu0 0.0
    %116 = vmatmul.mubr.f32.gmra.mrb[0].mxu0 %v27
    %v117 = vpop.f32.mrb[0].mxu0
    %v118 = vadd.f32 %v49, %v117
    %v119 = vpop.f32.mrb[0].mxu0
    %120 = vdwg.mxu0
    %v121 = vmax.f32 %v118, 0.0
    %v122 = vld [vmem:[%s3] sm:$0xff]
    %v123 = vld [vmem:[%s3 + $0x8] sm:$0xff]
    %v124 = vld [vmem:[%s3 + $0x10] sm:$0xff]
    %v125 = vld [vmem:[%s3 + $0x18] sm:$0xff]
    %v126 = vld [vmem:[%s4] sm:$0x1]
    %v128 = vlaneseq
    %v129 = vshrl.u32 %v128, 7
    %v130 = vsub.s32 0, %v129
    %v131 = vrot.slane %v126, %v130
    %vm133 = vcmask 261120
    %v135 = vsel %vm133, %v121, 0
    %137 = vmatprep.subr.mxu0 0.0
    %138 = vmatpush1.msra.mxu0 %v122
    %139 = vmatprep.subr.mxu0 0.0
    %140 = vmatpush1.msra.mxu0 %v123
    %141 = vmatprep.subr.mxu0 0.0
    %142 = vmatpush1.msra.mxu0 %v124
    %143 = vmatprep.subr.mxu0 0.0
    %144 = vmatpush1.msra.mxu0 %v125
    %145 = vmatprep.subr.mxu0 0.0
    %146 = vmatpush1.msra.mxu0 0.0
    %147 = vmatprep.subr.mxu0 0.0
    %148 = vmatpush1.msra.mxu0 0.0
    %149 = vmatprep.subr.mxu0 0.0
    %150 = vmatpush1.msra.mxu0 0.0
    %151 = vmatprep.subr.mxu0 0.0
    %152 = vmatpush1.msra.mxu0 0.0
    %153 = vmatprep.subr.mxu0 0.0
    %154 = vmatpush1.msra.mxu0 0.0
    %155 = vmatprep.subr.mxu0 0.0
    %156 = vmatpush1.msra.mxu0 0.0
    %157 = vmatprep.subr.mxu0 0.0
    %158 = vmatpush1.msra.mxu0 0.0
    %159 = vmatprep.subr.mxu0 0.0
    %160 = vmatpush1.msra.mxu0 0.0
    %161 = vmatprep.subr.mxu0 0.0
    %162 = vmatpush1.msra.mxu0 0.0
    %163 = vmatprep.subr.mxu0 0.0
    %164 = vmatpush1.msra.mxu0 0.0
    %165 = vmatprep.subr.mxu0 0.0
    %166 = vmatpush1.msra.mxu0 0.0
    %167 = vmatprep.subr.mxu0 0.0
    %168 = vmatpush1.msra.mxu0 0.0
    %169 = vmatprep.subr.mxu0 0.0
    %170 = vmatpush1.msra.mxu0 0.0
    %171 = vmatprep.subr.mxu0 0.0
    %172 = vmatpush1.msra.mxu0 0.0
    %173 = vmatprep.subr.mxu0 0.0
    %174 = vmatpush1.msra.mxu0 0.0
    %175 = vmatprep.subr.mxu0 0.0
    %176 = vmatpush1.msra.mxu0 0.0
    %177 = vmatprep.subr.mxu0 0.0
    %178 = vmatpush1.msra.mxu0 0.0
    %179 = vmatprep.subr.mxu0 0.0
    %180 = vmatpush1.msra.mxu0 0.0
    %181 = vmatprep.subr.mxu0 0.0
    %182 = vmatpush1.msra.mxu0 0.0
    %183 = vmatprep.subr.mxu0 0.0
    %184 = vmatpush1.msra.mxu0 0.0
    %185 = vmatprep.subr.mxu0 0.0
    %186 = vmatpush1.msra.mxu0 0.0
    %187 = vmatprep.subr.mxu0 0.0
    %188 = vmatpush1.msra.mxu0 0.0
    %189 = vmatprep.subr.mxu0 0.0
    %190 = vmatpush1.msra.mxu0 0.0
    %191 = vmatprep.subr.mxu0 0.0
    %192 = vmatpush1.msra.mxu0 0.0
    %193 = vmatprep.subr.mxu0 0.0
    %194 = vmatpush1.msra.mxu0 0.0
    %195 = vmatprep.subr.mxu0 0.0
    %196 = vmatpush1.msra.mxu0 0.0
    %197 = vmatprep.subr.mxu0 0.0
    %198 = vmatpush1.msra.mxu0 0.0
    %199 = vmatprep.subr.mxu0 0.0
    %200 = vmatpush1.msra.mxu0 0.0
    %201 = vmatprep.mubr.f32.mxu0 0.0
    %202 = vmatmul.mubr.f32.gmra.mrb[0].mxu0 %v135
    %v203 = vpop.f32.mrb[0].mxu0
    %v204 = vadd.f32 %v131, %v203
    %v205 = vpop.f32.mrb[0].mxu0
    %206 = vdwg.mxu0
    %v207 = vmax.f32 %v204, 0.0
    %v208 = vld [vmem:[%s5] sm:$0xff]
    %v209 = vld [vmem:[%s5 + $0x8] sm:$0xff]
    %v210 = vld [vmem:[%s5 + $0x10] sm:$0xff]
    %v211 = vld [vmem:[%s5 + $0x18] sm:$0xff]
    %v212 = vld [vmem:[%s6] sm:$0x1]
    %v214 = vlaneseq
    %v215 = vshrl.u32 %v214, 7
    %v216 = vsub.s32 0, %v215
    %v217 = vrot.slane %v212, %v216
    %v220 = vsel %vm133, %v207, 0
    %222 = vmatprep.subr.mxu0 0.0
    %223 = vmatpush1.msra.mxu0 %v208
    %224 = vmatprep.subr.mxu0 0.0
    %225 = vmatpush1.msra.mxu0 %v209
    %226 = vmatprep.subr.mxu0 0.0
    %227 = vmatpush1.msra.mxu0 %v210
    %228 = vmatprep.subr.mxu0 0.0
    %229 = vmatpush1.msra.mxu0 %v211
    %230 = vmatprep.subr.mxu0 0.0
    %231 = vmatpush1.msra.mxu0 0.0
    %232 = vmatprep.subr.mxu0 0.0
    %233 = vmatpush1.msra.mxu0 0.0
    %234 = vmatprep.subr.mxu0 0.0
    %235 = vmatpush1.msra.mxu0 0.0
    %236 = vmatprep.subr.mxu0 0.0
    %237 = vmatpush1.msra.mxu0 0.0
    %238 = vmatprep.subr.mxu0 0.0
    %239 = vmatpush1.msra.mxu0 0.0
    %240 = vmatprep.subr.mxu0 0.0
    %241 = vmatpush1.msra.mxu0 0.0
    %242 = vmatprep.subr.mxu0 0.0
    %243 = vmatpush1.msra.mxu0 0.0
    %244 = vmatprep.subr.mxu0 0.0
    %245 = vmatpush1.msra.mxu0 0.0
    %246 = vmatprep.subr.mxu0 0.0
    %247 = vmatpush1.msra.mxu0 0.0
    %248 = vmatprep.subr.mxu0 0.0
    %249 = vmatpush1.msra.mxu0 0.0
    %250 = vmatprep.subr.mxu0 0.0
    %251 = vmatpush1.msra.mxu0 0.0
    %252 = vmatprep.subr.mxu0 0.0
    %253 = vmatpush1.msra.mxu0 0.0
    %254 = vmatprep.subr.mxu0 0.0
    %255 = vmatpush1.msra.mxu0 0.0
    %256 = vmatprep.subr.mxu0 0.0
    %257 = vmatpush1.msra.mxu0 0.0
    %258 = vmatprep.subr.mxu0 0.0
    %259 = vmatpush1.msra.mxu0 0.0
    %260 = vmatprep.subr.mxu0 0.0
    %261 = vmatpush1.msra.mxu0 0.0
    %262 = vmatprep.subr.mxu0 0.0
    %263 = vmatpush1.msra.mxu0 0.0
    %264 = vmatprep.subr.mxu0 0.0
    %265 = vmatpush1.msra.mxu0 0.0
    %266 = vmatprep.subr.mxu0 0.0
    %267 = vmatpush1.msra.mxu0 0.0
    %268 = vmatprep.subr.mxu0 0.0
    %269 = vmatpush1.msra.mxu0 0.0
    %270 = vmatprep.subr.mxu0 0.0
    %271 = vmatpush1.msra.mxu0 0.0
    %272 = vmatprep.subr.mxu0 0.0
    %273 = vmatpush1.msra.mxu0 0.0
    %274 = vmatprep.subr.mxu0 0.0
    %275 = vmatpush1.msra.mxu0 0.0
    %276 = vmatprep.subr.mxu0 0.0
    %277 = vmatpush1.msra.mxu0 0.0
    %278 = vmatprep.subr.mxu0 0.0
    %279 = vmatpush1.msra.mxu0 0.0
    %280 = vmatprep.subr.mxu0 0.0
    %281 = vmatpush1.msra.mxu0 0.0
    %282 = vmatprep.subr.mxu0 0.0
    %283 = vmatpush1.msra.mxu0 0.0
    %284 = vmatprep.subr.mxu0 0.0
    %285 = vmatpush1.msra.mxu0 0.0
    %286 = vmatprep.mubr.f32.mxu0 0.0
    %287 = vmatmul.mubr.f32.gmra.mrb[0].mxu0 %v220
    %v288 = vpop.f32.mrb[0].mxu0
    %v289 = vadd.f32 %v217, %v288
    %v290 = vpop.f32.mrb[0].mxu0
    %291 = vdwg.mxu0
    %v292 = vmax.f32 %v289, 0.0
    %v293 = vmul.f32 %v27, 0.4
    %v294 = vadd.f32 %v292, %v293
    %295 = vst [vmem:[#allocation2] sm:$0xff] %v294
    // Predicated region
    $region30: #{adapter_forward.1} parent=1 // pred_check
      _
    $region31: #{adapter_forward.1} parent=1 // pred_check_branch
      %297 = sbr.rel (0) target = $region33
    $region32: #{adapter_forward.1} parent=1 // pred_region
      %s299 = ssub.s32 128, 128
      %300 = vsyncadd [#allocation3], %s299
      %s302 = sshll.u32 [#allocation2], 4
      %s303 = int_to_ptr.vmem [resolvable:$true] %s302
      %305 = dma.vmem_to_hbm [thread:$0]  %s303, 128, %s7, [#allocation3]
    $region33: #{adapter_forward.1} parent=1 // pred_fallthru
      _
    // Predicated region
    $region34: #{adapter_forward.1} parent=1 // pred_check
      _
    $region35: #{adapter_forward.1} parent=1 // pred_check_branch
      %307 = sbr.rel (0) target = $region37
    $region36: #{adapter_forward.1} parent=1 // pred_region
      %308 = dma.done [#allocation3], 128
    $region37: #{adapter_forward.1} parent=1 // pred_fallthru
      _
    %309 = vsyncpa [#allocation3], 1

</llo_original>
